<compile_context>
chip_gen: v5e
topology: v5e:2x2
jax: 0.10.0
libtpu: 0.0.40
codegen_flags: <defaults>
</compile_context>

<pallas_src>
import numpy as np

import jax
import jax.numpy as jnp
from jax import lax
from jax.experimental import pallas as pl
from jax.experimental.pallas import tpu as pltpu


def rblock_kernel(x_ref, a1_ref, s1_ref, b1_ref, a2_ref, s2_ref, b2_ref,
                  out_ref, xs_ref, mid_ref):
    H, L = out_ref.shape                      # L = P * W * C (lane-dense, 128)

    # Zero ONLY the 4 halo rows, and only on the first grid step (the scratch
    # persists and the interior rows are fully overwritten every step).
    @pl.when(pl.program_id(0) == 0)
    def _zero_halos():
        zero = jnp.zeros((1, L), jnp.bfloat16)
        xs_ref[0:1, :] = zero
        xs_ref[H + 1:H + 2, :] = zero
        mid_ref[0:1, :] = zero
        mid_ref[H + 1:H + 2, :] = zero

    # ---- stage input into the bf16 halo scratch (single cast, no HBM pad) ----
    xs_ref[1:H + 1, :] = x_ref[...].astype(jnp.bfloat16)

    # ---- conv1 (+ folded BN1 + ReLU): 3 ky-tap MXU matmuls, K = N = L ----
    # NOTE: row offsets 1/2 are sublane-unaligned; if the bundle dump shows
    # retile copies here, switch to full (H+2,L) matmuls + pltpu.roll (XLU).
    acc1 = jnp.zeros((H, L), jnp.float32)
    for ky in range(3):
        acc1 += jnp.dot(xs_ref[ky:ky + H, :], a1_ref[ky],
                        preferred_element_type=jnp.float32)
    y = jnp.maximum(acc1 * s1_ref[...] + b1_ref[...], 0.0)

    # ---- stage conv1 output (bf16) for conv2 ----
    mid_ref[1:H + 1, :] = y.astype(jnp.bfloat16)

    # ---- conv2 (+ folded BN2): 3 ky-tap MXU matmuls ----
    acc2 = jnp.zeros((H, L), jnp.float32)
    for ky in range(3):
        acc2 += jnp.dot(mid_ref[ky:ky + H, :], a2_ref[ky],
                        preferred_element_type=jnp.float32)
    z = acc2 * s2_ref[...] + b2_ref[...]

    # ---- residual add (f32, reuses the single x fetch) + final ReLU ----
    out_ref[...] = jnp.maximum(z + x_ref[...], 0.0)


def fold_bn(conv_bias, gamma, beta, mean, var, eps=1e-5):
    """Fold eval-mode BatchNorm (applied after a biased conv) into scale/bias."""
    scale = gamma / jnp.sqrt(var + eps)                 # (C,)
    bias = (conv_bias - mean) * scale + beta            # (C,)
    return scale, bias


def band_weights(w_hwio, W):
    """Fold the 3 kx taps + C_in contraction of a 3x3 conv into banded matrices.

    Returns A of shape (3, W*C, W*C) with
      A[ky][(x+kx-1)*C + ci, x*C + co] = w[ky, kx, ci, co]
    (taps falling outside [0, W) are dropped == implicit zero padding in W).
    """
    w = np.asarray(w_hwio, np.float32)
    C = w.shape[2]
    A = np.zeros((3, W * C, W * C), np.float32)
    for ky in range(3):
        for kx in range(3):
            for x in range(W):
                src = x + kx - 1
                if 0 <= src < W:
                    A[ky, src * C:(src + 1) * C, x * C:(x + 1) * C] = w[ky, kx]
    return A


def prepare_rblock(params, W, P):
    """One-time weight prep: block-diagonal banded conv matrices (bf16, P images
    packed along the lane dim) + lane-broadcast folded-BN scale/bias (f32)."""
    w1, s1, b1, w2, s2, b2 = params
    C = w1.shape[2]
    WC = W * C
    L = P * WC
    A1 = band_weights(w1, W)                              # (3, WC, WC)
    A2 = band_weights(w2, W)
    A1p = np.zeros((3, L, L), np.float32)
    A2p = np.zeros((3, L, L), np.float32)
    for p in range(P):                                    # block-diagonal pack
        A1p[:, p * WC:(p + 1) * WC, p * WC:(p + 1) * WC] = A1
        A2p[:, p * WC:(p + 1) * WC, p * WC:(p + 1) * WC] = A2
    s1l = jnp.tile(s1, W * P).reshape(1, L).astype(jnp.float32)
    b1l = jnp.tile(b1, W * P).reshape(1, L).astype(jnp.float32)
    s2l = jnp.tile(s2, W * P).reshape(1, L).astype(jnp.float32)
    b2l = jnp.tile(b2, W * P).reshape(1, L).astype(jnp.float32)
    return (jnp.asarray(A1p, jnp.bfloat16), s1l, b1l,
            jnp.asarray(A2p, jnp.bfloat16), s2l, b2l)


def rblock_forward(x_nchw, prepped, P):
    A1, s1l, b1l, A2, s2l, b2l = prepped
    N, C, H, W = x_nchw.shape
    assert N % P == 0, "batch must be divisible by the lane-pack factor P"
    WC = W * C
    L = P * WC
    NB = N // P

    x = jnp.transpose(x_nchw, (0, 2, 3, 1)).astype(jnp.float32)      # NHWC
    # Pack P images side-by-side along the lane dim: (NB, H, P*W*C).
    xp = x.reshape(NB, P, H, WC).transpose(0, 2, 1, 3).reshape(NB, H, L)

    # Advisory cost (bf16 MXU operands, single f32 input fetch, no padded copy).
    flops = int(2 * 3 * 2 * NB * H * L * L)              # 2 convs x 3 ky taps
    bytes_accessed = int(xp.size * 4                     # x (f32, fetched once)
                         + NB * H * L * 4                # output (f32)
                         + (A1.size + A2.size) * 2       # bf16 band matrices
                         + 4 * L * 4)                    # scales / biases

    out2d = pl.pallas_call(
        rblock_kernel,
        out_shape=jax.ShapeDtypeStruct((NB, H, L), jnp.float32),
        grid_spec=pltpu.PrefetchScalarGridSpec(
            num_scalar_prefetch=0,
            grid=(NB,),
            in_specs=[
                pl.BlockSpec((None, H, L), lambda n: (n, 0, 0)),   # x (stage+res)
                pl.BlockSpec((3, L, L), lambda n: (0, 0, 0)),      # A1 (const)
                pl.BlockSpec((1, L), lambda n: (0, 0)),            # s1
                pl.BlockSpec((1, L), lambda n: (0, 0)),            # b1
                pl.BlockSpec((3, L, L), lambda n: (0, 0, 0)),      # A2 (const)
                pl.BlockSpec((1, L), lambda n: (0, 0)),            # s2
                pl.BlockSpec((1, L), lambda n: (0, 0)),            # b2
            ],
            out_specs=pl.BlockSpec((None, H, L), lambda n: (n, 0, 0)),
            scratch_shapes=[pltpu.VMEM((H + 2, L), jnp.bfloat16),   # input halo
                            pltpu.VMEM((H + 2, L), jnp.bfloat16)],  # conv1 out
        ),
        compiler_params=pltpu.CompilerParams(
            dimension_semantics=("parallel",),
            vmem_limit_bytes=32 * 1024 * 1024,
        ),
        cost_estimate=pl.CostEstimate(flops=flops, transcendentals=0,
                                      bytes_accessed=bytes_accessed),
    )(xp, A1, s1l, b1l, A2, s2l, b2l)

    # Unpack the lane-packed images and return to NCHW.
    out = (out2d.reshape(NB, H, P, W, C)
                .transpose(0, 2, 1, 3, 4)
                .reshape(N, H, W, C))
    return jnp.transpose(out, (0, 3, 1, 2))


def reference_forward(x_nchw, params):
    """Pure-JAX reference (same bf16-operand / f32-accumulate convention)."""
    w1, s1, b1, w2, s2, b2 = params
    x = jnp.transpose(x_nchw, (0, 2, 3, 1)).astype(jnp.float32)
    dn = ('NHWC', 'HWIO', 'NHWC')
    y = lax.conv_general_dilated(
        x.astype(jnp.bfloat16), w1.astype(jnp.bfloat16), (1, 1), 'SAME',
        dimension_numbers=dn, preferred_element_type=jnp.float32)
    y = jnp.maximum(y * s1 + b1, 0.0)
    z = lax.conv_general_dilated(
        y.astype(jnp.bfloat16), w2.astype(jnp.bfloat16), (1, 1), 'SAME',
        dimension_numbers=dn, preferred_element_type=jnp.float32)
    z = z * s2 + b2
    out = jnp.maximum(z + x, 0.0)
    return jnp.transpose(out, (0, 3, 1, 2))


def init_params(key, num_channel):
    C = num_channel
    keys = jax.random.split(key, 10)
    # conv weights stored in HWIO layout: w[ky, kx, cin, cout]
    w1 = jax.random.normal(keys[0], (3, 3, C, C), jnp.float32) * 0.1
    cb1 = jax.random.normal(keys[1], (C,), jnp.float32) * 0.1
    w2 = jax.random.normal(keys[2], (3, 3, C, C), jnp.float32) * 0.1
    cb2 = jax.random.normal(keys[3], (C,), jnp.float32) * 0.1
    # BatchNorm params / running stats (eval mode)
    g1 = 1.0 + 0.1 * jax.random.normal(keys[4], (C,), jnp.float32)
    beta1 = 0.1 * jax.random.normal(keys[5], (C,), jnp.float32)
    m1 = 0.1 * jax.random.normal(keys[6], (C,), jnp.float32)
    v1 = jax.random.uniform(keys[7], (C,), jnp.float32, 0.5, 1.5)
    g2 = 1.0 + 0.1 * jax.random.normal(keys[8], (C,), jnp.float32)
    beta2 = 0.1 * jax.random.normal(keys[9], (C,), jnp.float32)
    m2 = jnp.zeros((C,), jnp.float32)
    v2 = jnp.ones((C,), jnp.float32)
    s1, b1 = fold_bn(cb1, g1, beta1, m1, v1)
    s2, b2 = fold_bn(cb2, g2, beta2, m2, v2)
    return (w1, s1, b1, w2, s2, b2)


if __name__ == "__main__":
    key = jax.random.PRNGKey(0)
    k_x, k_p = jax.random.split(key)

    N, C, H, W = 2, 4, 16, 16
    x = jax.random.normal(k_x, (N, C, H, W), jnp.float32)
    params = init_params(k_p, C)

    # Pack enough images along the lane dim to reach a 128-wide last dimension.
    WC = W * C
    P = max(1, 128 // WC)
    if N % P != 0:
        P = 1
    prepped = prepare_rblock(params, W, P)

    out = rblock_forward(x, prepped, P)
    out = jax.block_until_ready(out)

    ref = reference_forward(x, params)
    assert out.shape == (N, C, H, W)
    max_err = jnp.max(jnp.abs(out - ref))
    # bf16 MXU operands with f32 accumulation: tolerance covers accumulation
    # order / double-rounding differences only (structural bugs are >> this).
    assert jnp.allclose(out, ref, atol=1e-2, rtol=1e-2), \
        f"max abs err {max_err}"

    print("KERNEL_OK")
</pallas_src>

<mosaic_0001>
module attributes {stable_mosaic.version = 11 : i64} {
  func.func @rblock_kernel(%arg0: i32, %arg1: memref<1x16x128xf32, #tpu.memory_space<vmem>>, %arg2: memref<3x128x128xbf16, #tpu.memory_space<vmem>>, %arg3: memref<1x128xf32, #tpu.memory_space<vmem>>, %arg4: memref<1x128xf32, #tpu.memory_space<vmem>>, %arg5: memref<3x128x128xbf16, #tpu.memory_space<vmem>>, %arg6: memref<1x128xf32, #tpu.memory_space<vmem>>, %arg7: memref<1x128xf32, #tpu.memory_space<vmem>>, %arg8: memref<1x16x128xf32, #tpu.memory_space<vmem>>, %arg9: memref<18x128xbf16, #tpu.memory_space<vmem>>, %arg10: memref<18x128xbf16, #tpu.memory_space<vmem>>) attributes {dimension_semantics = [#tpu.dimension_semantics<parallel>], iteration_bounds = array<i64: 1>, scalar_prefetch = 0 : i64, scratch_operands = 2 : i64, tpu.core_type = #tpu.core_type<tc>, window_params = [{transform_indices = @transform_0, window_bounds = array<i64: 1, 16, 128>}, {pipeline_mode = #tpu.pipeline_mode<synchronous>, transform_indices = @transform_1, window_bounds = array<i64: 3, 128, 128>}, {pipeline_mode = #tpu.pipeline_mode<synchronous>, transform_indices = @transform_2, window_bounds = array<i64: 1, 128>}, {pipeline_mode = #tpu.pipeline_mode<synchronous>, transform_indices = @transform_3, window_bounds = array<i64: 1, 128>}, {pipeline_mode = #tpu.pipeline_mode<synchronous>, transform_indices = @transform_4, window_bounds = array<i64: 3, 128, 128>}, {pipeline_mode = #tpu.pipeline_mode<synchronous>, transform_indices = @transform_5, window_bounds = array<i64: 1, 128>}, {pipeline_mode = #tpu.pipeline_mode<synchronous>, transform_indices = @transform_6, window_bounds = array<i64: 1, 128>}, {transform_indices = @transform_7, window_bounds = array<i64: 1, 16, 128>}]} {
    %c0_i32 = arith.constant 0 : i32
    %0 = arith.cmpi eq, %arg0, %c0_i32 : i32
    %1 = arith.extui %0 : i1 to i32
    %c0_i32_0 = arith.constant 0 : i32
    %2 = arith.cmpi ne, %1, %c0_i32_0 : i32
    scf.if %2 {
      %cst_58 = arith.constant 0.000000e+00 : bf16
      %63 = vector.broadcast %cst_58 : bf16 to vector<1x128xbf16>
      %c0_59 = arith.constant 0 : index
      %c0_60 = arith.constant 0 : index
      %64 = vector.load %arg9[%c0_59, %c0_60] : memref<18x128xbf16, #tpu.memory_space<vmem>>, vector<1x128xbf16>
      tpu.vector_store %arg9[%c0_59, %c0_60], %63 {strides = array<i32>} : memref<18x128xbf16, #tpu.memory_space<vmem>>, vector<1x128xbf16>,
      %c17 = arith.constant 17 : index
      %c0_61 = arith.constant 0 : index
      %65 = vector.load %arg9[%c17, %c0_61] : memref<18x128xbf16, #tpu.memory_space<vmem>>, vector<1x128xbf16>
      tpu.vector_store %arg9[%c17, %c0_61], %63 {strides = array<i32>} : memref<18x128xbf16, #tpu.memory_space<vmem>>, vector<1x128xbf16>,
      %c0_62 = arith.constant 0 : index
      %c0_63 = arith.constant 0 : index
      %66 = vector.load %arg10[%c0_62, %c0_63] : memref<18x128xbf16, #tpu.memory_space<vmem>>, vector<1x128xbf16>
      tpu.vector_store %arg10[%c0_62, %c0_63], %63 {strides = array<i32>} : memref<18x128xbf16, #tpu.memory_space<vmem>>, vector<1x128xbf16>,
      %c17_64 = arith.constant 17 : index
      %c0_65 = arith.constant 0 : index
      %67 = vector.load %arg10[%c17_64, %c0_65] : memref<18x128xbf16, #tpu.memory_space<vmem>>, vector<1x128xbf16>
      tpu.vector_store %arg10[%c17_64, %c0_65], %63 {strides = array<i32>} : memref<18x128xbf16, #tpu.memory_space<vmem>>, vector<1x128xbf16>,
    } else {
    }
    %c0 = arith.constant 0 : index
    %c0_1 = arith.constant 0 : index
    %c0_2 = arith.constant 0 : index
    %3 = vector.load %arg1[%c0, %c0_1, %c0_2] : memref<1x16x128xf32, #tpu.memory_space<vmem>>, vector<1x16x128xf32>
    %4 = vector.shape_cast %3 : vector<1x16x128xf32> to vector<16x128xf32>
    %5 = arith.truncf %4 : vector<16x128xf32> to vector<16x128xbf16>
    %c1 = arith.constant 1 : index
    %c0_3 = arith.constant 0 : index
    %6 = vector.load %arg9[%c1, %c0_3] : memref<18x128xbf16, #tpu.memory_space<vmem>>, vector<16x128xbf16>
    tpu.vector_store %arg9[%c1, %c0_3], %5 {strides = array<i32>} : memref<18x128xbf16, #tpu.memory_space<vmem>>, vector<16x128xbf16>,
    %cst = arith.constant 0.000000e+00 : f32
    %7 = vector.broadcast %cst : f32 to vector<16x128xf32>
    %c0_4 = arith.constant 0 : index
    %c0_5 = arith.constant 0 : index
    %8 = vector.load %arg9[%c0_4, %c0_5] : memref<18x128xbf16, #tpu.memory_space<vmem>>, vector<16x128xbf16>
    %c0_6 = arith.constant 0 : index
    %c0_7 = arith.constant 0 : index
    %c0_8 = arith.constant 0 : index
    %9 = vector.load %arg2[%c0_6, %c0_7, %c0_8] : memref<3x128x128xbf16, #tpu.memory_space<vmem>>, vector<1x128x128xbf16>
    %10 = vector.shape_cast %9 : vector<1x128x128xbf16> to vector<128x128xbf16>
    %cst_9 = arith.constant dense<0.000000e+00> : vector<16x128xf32>
    %11 = tpu.matmul %8, %10, %cst_9 {dimension_numbers = #tpu.dot_dimension_numbers<[1], [0], [0], [1], [0, 0, 1, 1], [], []>} : vector<16x128xbf16>, vector<128x128xbf16>, vector<16x128xf32> -> vector<16x128xf32>
    %12 = arith.addf %7, %11 : vector<16x128xf32>
    %c1_10 = arith.constant 1 : index
    %c0_11 = arith.constant 0 : index
    %13 = vector.load %arg9[%c1_10, %c0_11] : memref<18x128xbf16, #tpu.memory_space<vmem>>, vector<16x128xbf16>
    %c1_12 = arith.constant 1 : index
    %c0_13 = arith.constant 0 : index
    %c0_14 = arith.constant 0 : index
    %14 = vector.load %arg2[%c1_12, %c0_13, %c0_14] : memref<3x128x128xbf16, #tpu.memory_space<vmem>>, vector<1x128x128xbf16>
    %15 = vector.shape_cast %14 : vector<1x128x128xbf16> to vector<128x128xbf16>
    %cst_15 = arith.constant dense<0.000000e+00> : vector<16x128xf32>
    %16 = tpu.matmul %13, %15, %cst_15 {dimension_numbers = #tpu.dot_dimension_numbers<[1], [0], [0], [1], [0, 0, 1, 1], [], []>} : vector<16x128xbf16>, vector<128x128xbf16>, vector<16x128xf32> -> vector<16x128xf32>
    %17 = arith.addf %12, %16 : vector<16x128xf32>
    %c2 = arith.constant 2 : index
    %c0_16 = arith.constant 0 : index
    %18 = vector.load %arg9[%c2, %c0_16] : memref<18x128xbf16, #tpu.memory_space<vmem>>, vector<16x128xbf16>
    %c2_17 = arith.constant 2 : index
    %c0_18 = arith.constant 0 : index
    %c0_19 = arith.constant 0 : index
    %19 = vector.load %arg2[%c2_17, %c0_18, %c0_19] : memref<3x128x128xbf16, #tpu.memory_space<vmem>>, vector<1x128x128xbf16>
    %20 = vector.shape_cast %19 : vector<1x128x128xbf16> to vector<128x128xbf16>
    %cst_20 = arith.constant dense<0.000000e+00> : vector<16x128xf32>
    %21 = tpu.matmul %18, %20, %cst_20 {dimension_numbers = #tpu.dot_dimension_numbers<[1], [0], [0], [1], [0, 0, 1, 1], [], []>} : vector<16x128xbf16>, vector<128x128xbf16>, vector<16x128xf32> -> vector<16x128xf32>
    %22 = arith.addf %17, %21 : vector<16x128xf32>
    %c0_21 = arith.constant 0 : index
    %c0_22 = arith.constant 0 : index
    %23 = vector.load %arg3[%c0_21, %c0_22] : memref<1x128xf32, #tpu.memory_space<vmem>>, vector<1x128xf32>
    %24 = vector.broadcast %23 : vector<1x128xf32> to vector<16x128xf32>
    %25 = arith.mulf %22, %24 : vector<16x128xf32>
    %c0_23 = arith.constant 0 : index
    %c0_24 = arith.constant 0 : index
    %26 = vector.load %arg4[%c0_23, %c0_24] : memref<1x128xf32, #tpu.memory_space<vmem>>, vector<1x128xf32>
    %27 = vector.broadcast %26 : vector<1x128xf32> to vector<16x128xf32>
    %28 = arith.addf %25, %27 : vector<16x128xf32>
    %cst_25 = arith.constant 0.000000e+00 : f32
    %29 = vector.broadcast %cst_25 : f32 to vector<16x128xf32>
    %30 = arith.maximumf %28, %29 : vector<16x128xf32>
    %31 = arith.truncf %30 : vector<16x128xf32> to vector<16x128xbf16>
    %c1_26 = arith.constant 1 : index
    %c0_27 = arith.constant 0 : index
    %32 = vector.load %arg10[%c1_26, %c0_27] : memref<18x128xbf16, #tpu.memory_space<vmem>>, vector<16x128xbf16>
    tpu.vector_store %arg10[%c1_26, %c0_27], %31 {strides = array<i32>} : memref<18x128xbf16, #tpu.memory_space<vmem>>, vector<16x128xbf16>,
    %cst_28 = arith.constant 0.000000e+00 : f32
    %33 = vector.broadcast %cst_28 : f32 to vector<16x128xf32>
    %c0_29 = arith.constant 0 : index
    %c0_30 = arith.constant 0 : index
    %34 = vector.load %arg10[%c0_29, %c0_30] : memref<18x128xbf16, #tpu.memory_space<vmem>>, vector<16x128xbf16>
    %c0_31 = arith.constant 0 : index
    %c0_32 = arith.constant 0 : index
    %c0_33 = arith.constant 0 : index
    %35 = vector.load %arg5[%c0_31, %c0_32, %c0_33] : memref<3x128x128xbf16, #tpu.memory_space<vmem>>, vector<1x128x128xbf16>
    %36 = vector.shape_cast %35 : vector<1x128x128xbf16> to vector<128x128xbf16>
    %cst_34 = arith.constant dense<0.000000e+00> : vector<16x128xf32>
    %37 = tpu.matmul %34, %36, %cst_34 {dimension_numbers = #tpu.dot_dimension_numbers<[1], [0], [0], [1], [0, 0, 1, 1], [], []>} : vector<16x128xbf16>, vector<128x128xbf16>, vector<16x128xf32> -> vector<16x128xf32>
    %38 = arith.addf %33, %37 : vector<16x128xf32>
    %c1_35 = arith.constant 1 : index
    %c0_36 = arith.constant 0 : index
    %39 = vector.load %arg10[%c1_35, %c0_36] : memref<18x128xbf16, #tpu.memory_space<vmem>>, vector<16x128xbf16>
    %c1_37 = arith.constant 1 : index
    %c0_38 = arith.constant 0 : index
    %c0_39 = arith.constant 0 : index
    %40 = vector.load %arg5[%c1_37, %c0_38, %c0_39] : memref<3x128x128xbf16, #tpu.memory_space<vmem>>, vector<1x128x128xbf16>
    %41 = vector.shape_cast %40 : vector<1x128x128xbf16> to vector<128x128xbf16>
    %cst_40 = arith.constant dense<0.000000e+00> : vector<16x128xf32>
    %42 = tpu.matmul %39, %41, %cst_40 {dimension_numbers = #tpu.dot_dimension_numbers<[1], [0], [0], [1], [0, 0, 1, 1], [], []>} : vector<16x128xbf16>, vector<128x128xbf16>, vector<16x128xf32> -> vector<16x128xf32>
    %43 = arith.addf %38, %42 : vector<16x128xf32>
    %c2_41 = arith.constant 2 : index
    %c0_42 = arith.constant 0 : index
    %44 = vector.load %arg10[%c2_41, %c0_42] : memref<18x128xbf16, #tpu.memory_space<vmem>>, vector<16x128xbf16>
    %c2_43 = arith.constant 2 : index
    %c0_44 = arith.constant 0 : index
    %c0_45 = arith.constant 0 : index
    %45 = vector.load %arg5[%c2_43, %c0_44, %c0_45] : memref<3x128x128xbf16, #tpu.memory_space<vmem>>, vector<1x128x128xbf16>
    %46 = vector.shape_cast %45 : vector<1x128x128xbf16> to vector<128x128xbf16>
    %cst_46 = arith.constant dense<0.000000e+00> : vector<16x128xf32>
    %47 = tpu.matmul %44, %46, %cst_46 {dimension_numbers = #tpu.dot_dimension_numbers<[1], [0], [0], [1], [0, 0, 1, 1], [], []>} : vector<16x128xbf16>, vector<128x128xbf16>, vector<16x128xf32> -> vector<16x128xf32>
    %48 = arith.addf %43, %47 : vector<16x128xf32>
    %c0_47 = arith.constant 0 : index
    %c0_48 = arith.constant 0 : index
    %49 = vector.load %arg6[%c0_47, %c0_48] : memref<1x128xf32, #tpu.memory_space<vmem>>, vector<1x128xf32>
    %50 = vector.broadcast %49 : vector<1x128xf32> to vector<16x128xf32>
    %51 = arith.mulf %48, %50 : vector<16x128xf32>
    %c0_49 = arith.constant 0 : index
    %c0_50 = arith.constant 0 : index
    %52 = vector.load %arg7[%c0_49, %c0_50] : memref<1x128xf32, #tpu.memory_space<vmem>>, vector<1x128xf32>
    %53 = vector.broadcast %52 : vector<1x128xf32> to vector<16x128xf32>
    %54 = arith.addf %51, %53 : vector<16x128xf32>
    %c0_51 = arith.constant 0 : index
    %c0_52 = arith.constant 0 : index
    %c0_53 = arith.constant 0 : index
    %55 = vector.load %arg1[%c0_51, %c0_52, %c0_53] : memref<1x16x128xf32, #tpu.memory_space<vmem>>, vector<1x16x128xf32>
    %56 = vector.shape_cast %55 : vector<1x16x128xf32> to vector<16x128xf32>
    %57 = arith.addf %54, %56 : vector<16x128xf32>
    %cst_54 = arith.constant 0.000000e+00 : f32
    %58 = vector.broadcast %cst_54 : f32 to vector<16x128xf32>
    %59 = arith.maximumf %57, %58 : vector<16x128xf32>
    %c0_55 = arith.constant 0 : index
    %c0_56 = arith.constant 0 : index
    %c0_57 = arith.constant 0 : index
    %60 = vector.load %arg8[%c0_55, %c0_56, %c0_57] : memref<1x16x128xf32, #tpu.memory_space<vmem>>, vector<1x16x128xf32>
    %61 = vector.shape_cast %60 : vector<1x16x128xf32> to vector<16x128xf32>
    %62 = vector.shape_cast %59 : vector<16x128xf32> to vector<1x16x128xf32>
    tpu.vector_store %arg8[%c0_55, %c0_56, %c0_57], %62 {strides = array<i32>} : memref<1x16x128xf32, #tpu.memory_space<vmem>>, vector<1x16x128xf32>,
    return
  }
  func.func @transform_0(%arg0: i32) -> (i32, i32, i32) {
    %c0_i32 = arith.constant 0 : i32
    %c0_i32_0 = arith.constant 0 : i32
    %c0_i32_1 = arith.constant 0 : i32
    return %arg0, %c0_i32, %c0_i32_0 : i32, i32, i32
  }
  func.func @transform_1(%arg0: i32) -> (i32, i32, i32) {
    %c0_i32 = arith.constant 0 : i32
    %c0_i32_0 = arith.constant 0 : i32
    %c0_i32_1 = arith.constant 0 : i32
    %c0_i32_2 = arith.constant 0 : i32
    return %c0_i32, %c0_i32_0, %c0_i32_1 : i32, i32, i32
  }
  func.func @transform_2(%arg0: i32) -> (i32, i32) {
    %c0_i32 = arith.constant 0 : i32
    %c0_i32_0 = arith.constant 0 : i32
    %c0_i32_1 = arith.constant 0 : i32
    return %c0_i32, %c0_i32_0 : i32, i32
  }
  func.func @transform_3(%arg0: i32) -> (i32, i32) {
    %c0_i32 = arith.constant 0 : i32
    %c0_i32_0 = arith.constant 0 : i32
    %c0_i32_1 = arith.constant 0 : i32
    return %c0_i32, %c0_i32_0 : i32, i32
  }
  func.func @transform_4(%arg0: i32) -> (i32, i32, i32) {
    %c0_i32 = arith.constant 0 : i32
    %c0_i32_0 = arith.constant 0 : i32
    %c0_i32_1 = arith.constant 0 : i32
    %c0_i32_2 = arith.constant 0 : i32
    return %c0_i32, %c0_i32_0, %c0_i32_1 : i32, i32, i32
  }
  func.func @transform_5(%arg0: i32) -> (i32, i32) {
    %c0_i32 = arith.constant 0 : i32
    %c0_i32_0 = arith.constant 0 : i32
    %c0_i32_1 = arith.constant 0 : i32
    return %c0_i32, %c0_i32_0 : i32, i32
  }
  func.func @transform_6(%arg0: i32) -> (i32, i32) {
    %c0_i32 = arith.constant 0 : i32
    %c0_i32_0 = arith.constant 0 : i32
    %c0_i32_1 = arith.constant 0 : i32
    return %c0_i32, %c0_i32_0 : i32, i32
  }
  func.func @transform_7(%arg0: i32) -> (i32, i32, i32) {
    %c0_i32 = arith.constant 0 : i32
    %c0_i32_0 = arith.constant 0 : i32
    %c0_i32_1 = arith.constant 0 : i32
    return %arg0, %c0_i32, %c0_i32_0 : i32, i32, i32
  }
}

</mosaic_0001>

<llo_original>
// kernel: tpu_custom_call.1
$region0: #{tpu_custom_call.1}
  #allocation0 [shape = 'u32[]', space=smem, size = 0x4, offset = 0x4, fixed_abs, tag = 'smem constant byte address 0x4 - core index']
  #allocation1 [shape = 'u32[72,128]{1,0:T(1,128)}', space=vmem, size = 0x9000, scoped, tag = 'internal scratch']
  #allocation2 [shape = 'bf16[18,128]{1,0:T(8,128)(2,1)}', space=vmem, size = 0x1800, scoped, tag = 'scratch operand']
  #allocation3 [shape = 'bf16[18,128]{1,0:T(8,128)(2,1)}', space=vmem, size = 0x1800, scoped, tag = 'scratch operand']
  %s0 = inlined_call_operand.hbm [shape: f32[1,16,128], index: 0, kind: input, shape index: {}]
  %s1 = inlined_call_operand.hbm [shape: bf16[3,128,128], index: 1, kind: input, shape index: {}]
  %s2 = inlined_call_operand.vmem [shape: f32[1,128], index: 2, kind: input, shape index: {}]
  %s3 = inlined_call_operand.vmem [shape: f32[1,128], index: 3, kind: input, shape index: {}]
  %s4 = inlined_call_operand.hbm [shape: bf16[3,128,128], index: 4, kind: input, shape index: {}]
  %s5 = inlined_call_operand.vmem [shape: f32[1,128], index: 5, kind: input, shape index: {}]
  %s6 = inlined_call_operand.vmem [shape: f32[1,128], index: 6, kind: input, shape index: {}]
  %s7 = inlined_call_operand.hbm [shape: f32[1,16,128], index: 7, kind: output, shape index: {}]
  %s8 = sld [smem:[#allocation0]]
  $region54: #{tpu_custom_call.1} parent=0
    _
  %s10 = ssub.s32 1, %s8
  %s11 = scalar_select 0, %s10, %s8
  $region1: #{tpu_custom_call.1} parent=0
    #allocation4 [shape = 'u8[8192]{0}', space=vmem, size = 0x2000, scoped, tag = 'input window, operand 0, single buffered']
    #allocation5 [shape = 's32[1]{0}', space=sflag, size = 0x4, scoped, tag = 'scoped memory for tpu_custom_call.1']
    #allocation6 [shape = 's32[1]{0}', space=sflag, size = 0x4, scoped, tag = 'scoped memory for tpu_custom_call.1']
    #allocation7 [shape = 'u8[98304]{0}', space=vmem, size = 0x18000, scoped, tag = 'input window, operand 1, single buffered']
    #allocation8 [shape = 's32[1]{0}', space=sflag, size = 0x4, scoped, tag = 'scoped memory for tpu_custom_call.1']
    #allocation9 [shape = 'u8[98304]{0}', space=vmem, size = 0x18000, scoped, tag = 'input window, operand 4, single buffered']
    #allocation10 [shape = 'u8[8192]{0}', space=vmem, size = 0x2000, scoped, tag = 'output window, operand 0, single buffered']
    %12 = vsyncpa [#allocation5], 0
    %13 = vsyncpa [#allocation8], 0
    %14 = vsyncpa [#allocation6], 0
    // Predicated region
    $region2: #{tpu_custom_call.1} parent=1 // pred_check
      _
    $region3: #{tpu_custom_call.1} parent=1 // pred_check_branch
      %16 = sbr.rel (0) target = $region5
    $region4: #{tpu_custom_call.1} parent=1 // pred_region
      %18 = vsyncadd [#allocation5], 0
      %s19 = sshll.u32 %s0, 4
      %s20 = int_to_ptr.hbm [resolvable:$true] %s19
      %s21 = sshll.u32 [#allocation4], 4
      %s22 = int_to_ptr.vmem [resolvable:$true] %s21
      %27 = dma.hbm_to_vmem [thread:$0]  %s20, 256, %s22, [#allocation5], 128, 128, 8
    $region5: #{tpu_custom_call.1} parent=1 // pred_fallthru
      _
    // Predicated region
    $region6: #{tpu_custom_call.1} parent=1 // pred_check
      _
    $region7: #{tpu_custom_call.1} parent=1 // pred_check_branch
      %29 = sbr.rel (0) target = $region9
    $region8: #{tpu_custom_call.1} parent=1 // pred_region
      %31 = vsyncadd [#allocation8], 0
      %s32 = sshll.u32 %s1, 4
      %s33 = int_to_ptr.hbm [resolvable:$true] %s32
      %s34 = sshll.u32 [#allocation7], 4
      %s35 = int_to_ptr.vmem [resolvable:$true] %s34
      %40 = dma.hbm_to_vmem [thread:$0]  %s33, 3072, %s35, [#allocation8], 64, 64, 4
    $region9: #{tpu_custom_call.1} parent=1 // pred_fallthru
      _
    // Predicated region
    $region10: #{tpu_custom_call.1} parent=1 // pred_check
      _
    $region11: #{tpu_custom_call.1} parent=1 // pred_check_branch
      %42 = sbr.rel (0) target = $region13
    $region12: #{tpu_custom_call.1} parent=1 // pred_region
      _
    $region13: #{tpu_custom_call.1} parent=1 // pred_fallthru
      _
    // Predicated region
    $region14: #{tpu_custom_call.1} parent=1 // pred_check
      _
    $region15: #{tpu_custom_call.1} parent=1 // pred_check_branch
      %44 = sbr.rel (0) target = $region17
    $region16: #{tpu_custom_call.1} parent=1 // pred_region
      _
    $region17: #{tpu_custom_call.1} parent=1 // pred_fallthru
      _
    // Predicated region
    $region18: #{tpu_custom_call.1} parent=1 // pred_check
      _
    $region19: #{tpu_custom_call.1} parent=1 // pred_check_branch
      %46 = sbr.rel (0) target = $region21
    $region20: #{tpu_custom_call.1} parent=1 // pred_region
      %48 = vsyncadd [#allocation8], 0
      %s49 = sshll.u32 %s4, 4
      %s50 = int_to_ptr.hbm [resolvable:$true] %s49
      %s51 = sshll.u32 [#allocation9], 4
      %s52 = int_to_ptr.vmem [resolvable:$true] %s51
      %57 = dma.hbm_to_vmem [thread:$0]  %s50, 3072, %s52, [#allocation8], 64, 64, 4
    $region21: #{tpu_custom_call.1} parent=1 // pred_fallthru
      _
    // Predicated region
    $region22: #{tpu_custom_call.1} parent=1 // pred_check
      _
    $region23: #{tpu_custom_call.1} parent=1 // pred_check_branch
      %59 = sbr.rel (0) target = $region25
    $region24: #{tpu_custom_call.1} parent=1 // pred_region
      _
    $region25: #{tpu_custom_call.1} parent=1 // pred_fallthru
      _
    // Predicated region
    $region26: #{tpu_custom_call.1} parent=1 // pred_check
      _
    $region27: #{tpu_custom_call.1} parent=1 // pred_check_branch
      %61 = sbr.rel (0) target = $region29
    $region28: #{tpu_custom_call.1} parent=1 // pred_region
      _
    $region29: #{tpu_custom_call.1} parent=1 // pred_fallthru
      _
    // Predicated region
    $region30: #{tpu_custom_call.1} parent=1 // pred_check
      _
    $region31: #{tpu_custom_call.1} parent=1 // pred_check_branch
      %63 = sbr.rel (0) target = $region33
    $region32: #{tpu_custom_call.1} parent=1 // pred_region
      %65 = dma.done [#allocation5], 256
    $region33: #{tpu_custom_call.1} parent=1 // pred_fallthru
      _
    // Predicated region
    $region34: #{tpu_custom_call.1} parent=1 // pred_check
      _
    $region35: #{tpu_custom_call.1} parent=1 // pred_check_branch
      %67 = sbr.rel (0) target = $region37
    $region36: #{tpu_custom_call.1} parent=1 // pred_region
      %69 = dma.done [#allocation8], 3072
    $region37: #{tpu_custom_call.1} parent=1 // pred_fallthru
      _
    // Predicated region
    $region38: #{tpu_custom_call.1} parent=1 // pred_check
      _
    $region39: #{tpu_custom_call.1} parent=1 // pred_check_branch
      %71 = sbr.rel (0) target = $region41
    $region40: #{tpu_custom_call.1} parent=1 // pred_region
      %73 = dma.done [#allocation8], 3072
    $region41: #{tpu_custom_call.1} parent=1 // pred_fallthru
      _
    %p75 = scmp.eq.s32.totalorder 0, 0
    // Predicated region
    $region42: #{tpu_custom_call.1} parent=1 // pred_check
      %p76 = pneg %p75
    $region43: #{tpu_custom_call.1} parent=1 // pred_check_branch
      %78 = sbr.rel (%p76) target = $region45
    $region44: #{tpu_custom_call.1} parent=1 // pred_region
      %vm79 = vcmask 1040384
      %vm80 = vsmask.f32 256
      %vm81 = vmand %vm79, %vm80
      %v82 = vld [vmem:[#allocation2] sm:$0x1]
      %v83 = vsel %vm81, 0, %v82
      %84 = vst [vmem:[#allocation2] sm:$0x1] %v83
      %vm85 = vsmask.f32 7938
      %vm86 = vmand %vm79, %vm85
      %v87 = vld [vmem:[#allocation2 + $0x8] sm:$0x1]
      %v88 = vsel %vm86, 0, %v87
      %89 = vst [vmem:[#allocation2 + $0x8] sm:$0x1] %v88
      %v90 = vld [vmem:[#allocation3] sm:$0x1]
      %v91 = vsel %vm81, 0, %v90
      %92 = vst [vmem:[#allocation3] sm:$0x1] %v91
      %v93 = vld [vmem:[#allocation3 + $0x8] sm:$0x1]
      %v94 = vsel %vm86, 0, %v93
      %95 = vst [vmem:[#allocation3 + $0x8] sm:$0x1] %v94
    $region45: #{tpu_custom_call.1} parent=1 // pred_fallthru
      _
    %v96 = vld [vmem:[#allocation4] sm:$0xff]
    %v97 = vld [vmem:[#allocation4 + $0x8] sm:$0xff]
    %v98 = vpack.c.bf16 %v96, %v96
    %v99 = vpack.c.bf16 %v97, %v97
    %vm100 = vsmask.f32 256
    %vm101 = vsmask.f32 4368
    %vm102 = vmor %vm100, %vm101
    %v104 = vshrl.u32 %v98, 16
    %v106 = vrot.slane %v104, 7
    %v107 = vshll.u32 %v98, 16
    %v109 = vor.u32 %v106, %v107
    %v110 = vrot.slane %v106, 4
    %v112 = vshrl.u32 %v99, 16
    %v114 = vrot.slane %v112, 7
    %v115 = vshll.u32 %v99, 16
    %v117 = vor.u32 %v114, %v115
    %v118 = vsel %vm102, %v110, %v117
    %v119 = vrot.slane %v114, 4
    %vm123 = vcmask 1043456
    %vm124 = vsmask.f32 7938
    %vm125 = vmand %vm123, %vm124
    %v126 = vld [vmem:[#allocation2] sm:$0xf]
    %v127 = vsel %vm125, %v109, %v126
    %128 = vst [vmem:[#allocation2] sm:$0xf] %v127
    %129 = vst [vmem:[#allocation2 + $0x4] sm:$0xf] %v118
    %vm130 = vcmask 1040384
    %vm131 = vmand %vm130, %vm100
    %v132 = vld [vmem:[#allocation2 + $0x8] sm:$0x1]
    %v133 = vsel %vm131, %v119, %v132
    %134 = vst [vmem:[#allocation2 + $0x8] sm:$0x1] %v133
    %v135 = vld [vmem:[#allocation2] sm:$0xf]
    %v136 = vld [vmem:[#allocation2 + $0x4] sm:$0xf]
    %v137 = vld [vmem:[#allocation7] sm:$0xf]
    %v138 = vld [vmem:[#allocation7 + $0x4] sm:$0xf]
    %v139 = vld [vmem:[#allocation7 + $0x8] sm:$0xf]
    %v140 = vld [vmem:[#allocation7 + $0xc] sm:$0xf]
    %v141 = vld [vmem:[#allocation7 + $0x10] sm:$0xf]
    %v142 = vld [vmem:[#allocation7 + $0x14] sm:$0xf]
    %v143 = vld [vmem:[#allocation7 + $0x18] sm:$0xf]
    %v144 = vld [vmem:[#allocation7 + $0x1c] sm:$0xf]
    %v145 = vld [vmem:[#allocation7 + $0x20] sm:$0xf]
    %v146 = vld [vmem:[#allocation7 + $0x24] sm:$0xf]
    %v147 = vld [vmem:[#allocation7 + $0x28] sm:$0xf]
    %v148 = vld [vmem:[#allocation7 + $0x2c] sm:$0xf]
    %v149 = vld [vmem:[#allocation7 + $0x30] sm:$0xf]
    %v150 = vld [vmem:[#allocation7 + $0x34] sm:$0xf]
    %v151 = vld [vmem:[#allocation7 + $0x38] sm:$0xf]
    %v152 = vld [vmem:[#allocation7 + $0x3c] sm:$0xf]
    %v153 = vld [vmem:[#allocation2 + $0x8] sm:$0x1]
    %s154 = scalar_lea.vmem [#allocation7], 64
    %v155 = vld [vmem:[%s154] sm:$0xf]
    %v156 = vld [vmem:[%s154 + $0x4] sm:$0xf]
    %v157 = vld [vmem:[%s154 + $0x8] sm:$0xf]
    %v158 = vld [vmem:[%s154 + $0xc] sm:$0xf]
    %v159 = vld [vmem:[%s154 + $0x10] sm:$0xf]
    %v160 = vld [vmem:[%s154 + $0x14] sm:$0xf]
    %v161 = vld [vmem:[%s154 + $0x18] sm:$0xf]
    %v162 = vld [vmem:[%s154 + $0x1c] sm:$0xf]
    %v163 = vld [vmem:[%s154 + $0x20] sm:$0xf]
    %v164 = vld [vmem:[%s154 + $0x24] sm:$0xf]
    %v165 = vld [vmem:[%s154 + $0x28] sm:$0xf]
    %v166 = vld [vmem:[%s154 + $0x2c] sm:$0xf]
    %v167 = vld [vmem:[%s154 + $0x30] sm:$0xf]
    %v168 = vld [vmem:[%s154 + $0x34] sm:$0xf]
    %v169 = vld [vmem:[%s154 + $0x38] sm:$0xf]
    %v170 = vld [vmem:[%s154 + $0x3c] sm:$0xf]
    %v174 = vunpack.c.l.b16 %v135
    %v175 = vunpack.c.l.b16 %v136
    %v176 = vunpack.c.l.b16 %v153
    %v177 = vpack.c.b16 %v175, %v174
    %v178 = vpack.c.b16 %v176, %v176
    %vm179 = vsmask.f32 7424
    %v181 = vshrl.u32 %v177, 16
    %v183 = vshll.u32 %v177, 16
    %v185 = vrot.slane %v183, 1
    %v186 = vor.u32 %v181, %v185
    %v188 = vshll.u32 %v178, 16
    %v190 = vrot.slane %v188, 1
    %v191 = vsel %vm179, %v186, %v190
    %v209 = vunpack.c.l.b16 %v155
    %v210 = vunpack.c.l.b16 %v156
    %v211 = vunpack.c.l.b16 %v157
    %v212 = vunpack.c.l.b16 %v158
    %v213 = vunpack.c.l.b16 %v159
    %v214 = vunpack.c.l.b16 %v160
    %v215 = vunpack.c.l.b16 %v161
    %v216 = vunpack.c.l.b16 %v162
    %v217 = vunpack.c.l.b16 %v163
    %v218 = vunpack.c.l.b16 %v164
    %v219 = vunpack.c.l.b16 %v165
    %v220 = vunpack.c.l.b16 %v166
    %v221 = vunpack.c.l.b16 %v167
    %v222 = vunpack.c.l.b16 %v168
    %v223 = vunpack.c.l.b16 %v169
    %v224 = vunpack.c.l.b16 %v170
    %v225 = vpack.c.b16 %v210, %v209
    %v226 = vpack.c.b16 %v212, %v211
    %v227 = vpack.c.b16 %v214, %v213
    %v228 = vpack.c.b16 %v216, %v215
    %v229 = vpack.c.b16 %v218, %v217
    %v230 = vpack.c.b16 %v220, %v219
    %v231 = vpack.c.b16 %v222, %v221
    %v232 = vpack.c.b16 %v224, %v223
    %241 = vmatpush.bf16.msra.mxu0 %v232
    %242 = vmatpush.bf16.msra.mxu0 %v231
    %243 = vmatpush.bf16.msra.mxu0 %v230
    %244 = vmatpush.bf16.msra.mxu0 %v229
    %245 = vmatpush.bf16.msra.mxu0 %v228
    %246 = vmatpush.bf16.msra.mxu0 %v227
    %247 = vmatpush.bf16.msra.mxu0 %v226
    %248 = vmatpush.bf16.msra.mxu0 %v225
    %249 = vmatmul.bf16.gmra.mxu0 %v191
    %v250 = vpop.f32.mrf.mxu0
    %v251 = vadd.f32 0.0, %v250
    %v252 = vpop.f32.mrf.mxu0
    %v253 = vadd.f32 0.0, %v252
    %254 = vdwg.mxu0
    %v272 = vunpack.c.l.b16 %v137
    %v273 = vunpack.c.l.b16 %v138
    %v274 = vunpack.c.l.b16 %v139
    %v275 = vunpack.c.l.b16 %v140
    %v276 = vunpack.c.l.b16 %v141
    %v277 = vunpack.c.l.b16 %v142
    %v278 = vunpack.c.l.b16 %v143
    %v279 = vunpack.c.l.b16 %v144
    %v280 = vunpack.c.l.b16 %v145
    %v281 = vunpack.c.l.b16 %v146
    %v282 = vunpack.c.l.b16 %v147
    %v283 = vunpack.c.l.b16 %v148
    %v284 = vunpack.c.l.b16 %v149
    %v285 = vunpack.c.l.b16 %v150
    %v286 = vunpack.c.l.b16 %v151
    %v287 = vunpack.c.l.b16 %v152
    %v288 = vpack.c.b16 %v273, %v272
    %v289 = vpack.c.b16 %v275, %v274
    %v290 = vpack.c.b16 %v277, %v276
    %v291 = vpack.c.b16 %v279, %v278
    %v292 = vpack.c.b16 %v281, %v280
    %v293 = vpack.c.b16 %v283, %v282
    %v294 = vpack.c.b16 %v285, %v284
    %v295 = vpack.c.b16 %v287, %v286
    %304 = vmatpush.bf16.msra.mxu0 %v295
    %305 = vmatpush.bf16.msra.mxu0 %v294
    %306 = vmatpush.bf16.msra.mxu0 %v293
    %307 = vmatpush.bf16.msra.mxu0 %v292
    %308 = vmatpush.bf16.msra.mxu0 %v291
    %309 = vmatpush.bf16.msra.mxu0 %v290
    %310 = vmatpush.bf16.msra.mxu0 %v289
    %311 = vmatpush.bf16.msra.mxu0 %v288
    %312 = vmatmul.bf16.gmra.mxu0 %v177
    %v313 = vpop.f32.mrf.mxu0
    %v314 = vadd.f32 %v251, %v313
    %v315 = vpop.f32.mrf.mxu0
    %v316 = vadd.f32 %v253, %v315
    %317 = vdwg.mxu0
    %v318 = vld [vmem:[#allocation2] sm:$0xe]
    %s319 = scalar_lea.vmem [#allocation7], 128
    %v320 = vld [vmem:[%s319] sm:$0xf]
    %v321 = vld [vmem:[%s319 + $0x4] sm:$0xf]
    %v322 = vld [vmem:[%s319 + $0x8] sm:$0xf]
    %v323 = vld [vmem:[%s319 + $0xc] sm:$0xf]
    %v324 = vld [vmem:[%s319 + $0x10] sm:$0xf]
    %v325 = vld [vmem:[%s319 + $0x14] sm:$0xf]
    %v326 = vld [vmem:[%s319 + $0x18] sm:$0xf]
    %v327 = vld [vmem:[%s319 + $0x1c] sm:$0xf]
    %v328 = vld [vmem:[%s319 + $0x20] sm:$0xf]
    %v329 = vld [vmem:[%s319 + $0x24] sm:$0xf]
    %v330 = vld [vmem:[%s319 + $0x28] sm:$0xf]
    %v331 = vld [vmem:[%s319 + $0x2c] sm:$0xf]
    %v332 = vld [vmem:[%s319 + $0x30] sm:$0xf]
    %v333 = vld [vmem:[%s319 + $0x34] sm:$0xf]
    %v334 = vld [vmem:[%s319 + $0x38] sm:$0xf]
    %v335 = vld [vmem:[%s319 + $0x3c] sm:$0xf]
    %v337 = vunpack.c.l.b16 %v318
    %v338 = vpack.c.b16 %v175, %v337
    %vm339 = vcmask 1046528
    %v340 = vrot.slane %v338, 1
    %v341 = vrot.slane %v178, 1
    %v342 = vsel %vm339, %v340, %v341
    %v360 = vunpack.c.l.b16 %v320
    %v361 = vunpack.c.l.b16 %v321
    %v362 = vunpack.c.l.b16 %v322
    %v363 = vunpack.c.l.b16 %v323
    %v364 = vunpack.c.l.b16 %v324
    %v365 = vunpack.c.l.b16 %v325
    %v366 = vunpack.c.l.b16 %v326
    %v367 = vunpack.c.l.b16 %v327
    %v368 = vunpack.c.l.b16 %v328
    %v369 = vunpack.c.l.b16 %v329
    %v370 = vunpack.c.l.b16 %v330
    %v371 = vunpack.c.l.b16 %v331
    %v372 = vunpack.c.l.b16 %v332
    %v373 = vunpack.c.l.b16 %v333
    %v374 = vunpack.c.l.b16 %v334
    %v375 = vunpack.c.l.b16 %v335
    %v376 = vpack.c.b16 %v361, %v360
    %v377 = vpack.c.b16 %v363, %v362
    %v378 = vpack.c.b16 %v365, %v364
    %v379 = vpack.c.b16 %v367, %v366
    %v380 = vpack.c.b16 %v369, %v368
    %v381 = vpack.c.b16 %v371, %v370
    %v382 = vpack.c.b16 %v373, %v372
    %v383 = vpack.c.b16 %v375, %v374
    %392 = vmatpush.bf16.msra.mxu0 %v383
    %393 = vmatpush.bf16.msra.mxu0 %v382
    %394 = vmatpush.bf16.msra.mxu0 %v381
    %395 = vmatpush.bf16.msra.mxu0 %v380
    %396 = vmatpush.bf16.msra.mxu0 %v379
    %397 = vmatpush.bf16.msra.mxu0 %v378
    %398 = vmatpush.bf16.msra.mxu0 %v377
    %399 = vmatpush.bf16.msra.mxu0 %v376
    %400 = vmatmul.bf16.gmra.mxu0 %v342
    %v401 = vpop.f32.mrf.mxu0
    %v402 = vadd.f32 0.0, %v401
    %v403 = vpop.f32.mrf.mxu0
    %v404 = vadd.f32 0.0, %v403
    %405 = vdwg.mxu0
    %v406 = vadd.f32 %v314, %v402
    %v407 = vadd.f32 %v316, %v404
    %v408 = vld [vmem:[%s2] sm:$0x1]
    %v410 = vperm.slane %v408, 0
    %v412 = vmul.f32 %v406, %v410
    %v413 = vmul.f32 %v407, %v410
    %v414 = vld [vmem:[%s3] sm:$0x1]
    %v416 = vperm.slane %v414, 0
    %v418 = vadd.f32 %v412, %v416
    %v419 = vadd.f32 %v413, %v416
    %v420 = vmax.f32 %v418, 0.0
    %v421 = vmax.f32 %v419, 0.0
    %v422 = vpack.c.bf16 %v420, %v420
    %v423 = vpack.c.bf16 %v421, %v421
    %v425 = vshrl.u32 %v422, 16
    %v427 = vrot.slane %v425, 7
    %v428 = vshll.u32 %v422, 16
    %v430 = vor.u32 %v427, %v428
    %v431 = vrot.slane %v427, 4
    %v433 = vshrl.u32 %v423, 16
    %v435 = vrot.slane %v433, 7
    %v436 = vshll.u32 %v423, 16
    %v438 = vor.u32 %v435, %v436
    %v439 = vsel %vm102, %v431, %v438
    %v440 = vrot.slane %v435, 4
    %v444 = vld [vmem:[#allocation3] sm:$0xf]
    %v445 = vsel %vm125, %v430, %v444
    %446 = vst [vmem:[#allocation3] sm:$0xf] %v445
    %447 = vst [vmem:[#allocation3 + $0x4] sm:$0xf] %v439
    %v448 = vld [vmem:[#allocation3 + $0x8] sm:$0x1]
    %v449 = vsel %vm131, %v440, %v448
    %450 = vst [vmem:[#allocation3 + $0x8] sm:$0x1] %v449
    %v451 = vld [vmem:[#allocation3] sm:$0xf]
    %v452 = vld [vmem:[#allocation3 + $0x4] sm:$0xf]
    %v453 = vld [vmem:[#allocation9] sm:$0xf]
    %v454 = vld [vmem:[#allocation9 + $0x4] sm:$0xf]
    %v455 = vld [vmem:[#allocation9 + $0x8] sm:$0xf]
    %v456 = vld [vmem:[#allocation9 + $0xc] sm:$0xf]
    %v457 = vld [vmem:[#allocation9 + $0x10] sm:$0xf]
    %v458 = vld [vmem:[#allocation9 + $0x14] sm:$0xf]
    %v459 = vld [vmem:[#allocation9 + $0x18] sm:$0xf]
    %v460 = vld [vmem:[#allocation9 + $0x1c] sm:$0xf]
    %v461 = vld [vmem:[#allocation9 + $0x20] sm:$0xf]
    %v462 = vld [vmem:[#allocation9 + $0x24] sm:$0xf]
    %v463 = vld [vmem:[#allocation9 + $0x28] sm:$0xf]
    %v464 = vld [vmem:[#allocation9 + $0x2c] sm:$0xf]
    %v465 = vld [vmem:[#allocation9 + $0x30] sm:$0xf]
    %v466 = vld [vmem:[#allocation9 + $0x34] sm:$0xf]
    %v467 = vld [vmem:[#allocation9 + $0x38] sm:$0xf]
    %v468 = vld [vmem:[#allocation9 + $0x3c] sm:$0xf]
    %v469 = vld [vmem:[#allocation3 + $0x8] sm:$0x1]
    %s470 = scalar_lea.vmem [#allocation9], 64
    %v471 = vld [vmem:[%s470] sm:$0xf]
    %v472 = vld [vmem:[%s470 + $0x4] sm:$0xf]
    %v473 = vld [vmem:[%s470 + $0x8] sm:$0xf]
    %v474 = vld [vmem:[%s470 + $0xc] sm:$0xf]
    %v475 = vld [vmem:[%s470 + $0x10] sm:$0xf]
    %v476 = vld [vmem:[%s470 + $0x14] sm:$0xf]
    %v477 = vld [vmem:[%s470 + $0x18] sm:$0xf]
    %v478 = vld [vmem:[%s470 + $0x1c] sm:$0xf]
    %v479 = vld [vmem:[%s470 + $0x20] sm:$0xf]
    %v480 = vld [vmem:[%s470 + $0x24] sm:$0xf]
    %v481 = vld [vmem:[%s470 + $0x28] sm:$0xf]
    %v482 = vld [vmem:[%s470 + $0x2c] sm:$0xf]
    %v483 = vld [vmem:[%s470 + $0x30] sm:$0xf]
    %v484 = vld [vmem:[%s470 + $0x34] sm:$0xf]
    %v485 = vld [vmem:[%s470 + $0x38] sm:$0xf]
    %v486 = vld [vmem:[%s470 + $0x3c] sm:$0xf]
    %v490 = vunpack.c.l.b16 %v451
    %v491 = vunpack.c.l.b16 %v452
    %v492 = vunpack.c.l.b16 %v469
    %v493 = vpack.c.b16 %v491, %v490
    %v494 = vpack.c.b16 %v492, %v492
    %v496 = vshrl.u32 %v493, 16
    %v498 = vshll.u32 %v493, 16
    %v500 = vrot.slane %v498, 1
    %v501 = vor.u32 %v496, %v500
    %v503 = vshll.u32 %v494, 16
    %v505 = vrot.slane %v503, 1
    %v506 = vsel %vm179, %v501, %v505
    %v524 = vunpack.c.l.b16 %v471
    %v525 = vunpack.c.l.b16 %v472
    %v526 = vunpack.c.l.b16 %v473
    %v527 = vunpack.c.l.b16 %v474
    %v528 = vunpack.c.l.b16 %v475
    %v529 = vunpack.c.l.b16 %v476
    %v530 = vunpack.c.l.b16 %v477
    %v531 = vunpack.c.l.b16 %v478
    %v532 = vunpack.c.l.b16 %v479
    %v533 = vunpack.c.l.b16 %v480
    %v534 = vunpack.c.l.b16 %v481
    %v535 = vunpack.c.l.b16 %v482
    %v536 = vunpack.c.l.b16 %v483
    %v537 = vunpack.c.l.b16 %v484
    %v538 = vunpack.c.l.b16 %v485
    %v539 = vunpack.c.l.b16 %v486
    %v540 = vpack.c.b16 %v525, %v524
    %v541 = vpack.c.b16 %v527, %v526
    %v542 = vpack.c.b16 %v529, %v528
    %v543 = vpack.c.b16 %v531, %v530
    %v544 = vpack.c.b16 %v533, %v532
    %v545 = vpack.c.b16 %v535, %v534
    %v546 = vpack.c.b16 %v537, %v536
    %v547 = vpack.c.b16 %v539, %v538
    %556 = vmatpush.bf16.msra.mxu0 %v547
    %557 = vmatpush.bf16.msra.mxu0 %v546
    %558 = vmatpush.bf16.msra.mxu0 %v545
    %559 = vmatpush.bf16.msra.mxu0 %v544
    %560 = vmatpush.bf16.msra.mxu0 %v543
    %561 = vmatpush.bf16.msra.mxu0 %v542
    %562 = vmatpush.bf16.msra.mxu0 %v541
    %563 = vmatpush.bf16.msra.mxu0 %v540
    %564 = vmatmul.bf16.gmra.mxu0 %v506
    %v565 = vpop.f32.mrf.mxu0
    %v566 = vadd.f32 0.0, %v565
    %v567 = vpop.f32.mrf.mxu0
    %v568 = vadd.f32 0.0, %v567
    %569 = vdwg.mxu0
    %v587 = vunpack.c.l.b16 %v453
    %v588 = vunpack.c.l.b16 %v454
    %v589 = vunpack.c.l.b16 %v455
    %v590 = vunpack.c.l.b16 %v456
    %v591 = vunpack.c.l.b16 %v457
    %v592 = vunpack.c.l.b16 %v458
    %v593 = vunpack.c.l.b16 %v459
    %v594 = vunpack.c.l.b16 %v460
    %v595 = vunpack.c.l.b16 %v461
    %v596 = vunpack.c.l.b16 %v462
    %v597 = vunpack.c.l.b16 %v463
    %v598 = vunpack.c.l.b16 %v464
    %v599 = vunpack.c.l.b16 %v465
    %v600 = vunpack.c.l.b16 %v466
    %v601 = vunpack.c.l.b16 %v467
    %v602 = vunpack.c.l.b16 %v468
    %v603 = vpack.c.b16 %v588, %v587
    %v604 = vpack.c.b16 %v590, %v589
    %v605 = vpack.c.b16 %v592, %v591
    %v606 = vpack.c.b16 %v594, %v593
    %v607 = vpack.c.b16 %v596, %v595
    %v608 = vpack.c.b16 %v598, %v597
    %v609 = vpack.c.b16 %v600, %v599
    %v610 = vpack.c.b16 %v602, %v601
    %619 = vmatpush.bf16.msra.mxu0 %v610
    %620 = vmatpush.bf16.msra.mxu0 %v609
    %621 = vmatpush.bf16.msra.mxu0 %v608
    %622 = vmatpush.bf16.msra.mxu0 %v607
    %623 = vmatpush.bf16.msra.mxu0 %v606
    %624 = vmatpush.bf16.msra.mxu0 %v605
    %625 = vmatpush.bf16.msra.mxu0 %v604
    %626 = vmatpush.bf16.msra.mxu0 %v603
    %627 = vmatmul.bf16.gmra.mxu0 %v493
    %v628 = vpop.f32.mrf.mxu0
    %v629 = vadd.f32 %v566, %v628
    %v630 = vpop.f32.mrf.mxu0
    %v631 = vadd.f32 %v568, %v630
    %632 = vdwg.mxu0
    %v633 = vld [vmem:[#allocation3] sm:$0xe]
    %s634 = scalar_lea.vmem [#allocation9], 128
    %v635 = vld [vmem:[%s634] sm:$0xf]
    %v636 = vld [vmem:[%s634 + $0x4] sm:$0xf]
    %v637 = vld [vmem:[%s634 + $0x8] sm:$0xf]
    %v638 = vld [vmem:[%s634 + $0xc] sm:$0xf]
    %v639 = vld [vmem:[%s634 + $0x10] sm:$0xf]
    %v640 = vld [vmem:[%s634 + $0x14] sm:$0xf]
    %v641 = vld [vmem:[%s634 + $0x18] sm:$0xf]
    %v642 = vld [vmem:[%s634 + $0x1c] sm:$0xf]
    %v643 = vld [vmem:[%s634 + $0x20] sm:$0xf]
    %v644 = vld [vmem:[%s634 + $0x24] sm:$0xf]
    %v645 = vld [vmem:[%s634 + $0x28] sm:$0xf]
    %v646 = vld [vmem:[%s634 + $0x2c] sm:$0xf]
    %v647 = vld [vmem:[%s634 + $0x30] sm:$0xf]
    %v648 = vld [vmem:[%s634 + $0x34] sm:$0xf]
    %v649 = vld [vmem:[%s634 + $0x38] sm:$0xf]
    %v650 = vld [vmem:[%s634 + $0x3c] sm:$0xf]
    %v652 = vunpack.c.l.b16 %v633
    %v653 = vpack.c.b16 %v491, %v652
    %v654 = vrot.slane %v653, 1
    %v655 = vrot.slane %v494, 1
    %v656 = vsel %vm339, %v654, %v655
    %v674 = vunpack.c.l.b16 %v635
    %v675 = vunpack.c.l.b16 %v636
    %v676 = vunpack.c.l.b16 %v637
    %v677 = vunpack.c.l.b16 %v638
    %v678 = vunpack.c.l.b16 %v639
    %v679 = vunpack.c.l.b16 %v640
    %v680 = vunpack.c.l.b16 %v641
    %v681 = vunpack.c.l.b16 %v642
    %v682 = vunpack.c.l.b16 %v643
    %v683 = vunpack.c.l.b16 %v644
    %v684 = vunpack.c.l.b16 %v645
    %v685 = vunpack.c.l.b16 %v646
    %v686 = vunpack.c.l.b16 %v647
    %v687 = vunpack.c.l.b16 %v648
    %v688 = vunpack.c.l.b16 %v649
    %v689 = vunpack.c.l.b16 %v650
    %v690 = vpack.c.b16 %v675, %v674
    %v691 = vpack.c.b16 %v677, %v676
    %v692 = vpack.c.b16 %v679, %v678
    %v693 = vpack.c.b16 %v681, %v680
    %v694 = vpack.c.b16 %v683, %v682
    %v695 = vpack.c.b16 %v685, %v684
    %v696 = vpack.c.b16 %v687, %v686
    %v697 = vpack.c.b16 %v689, %v688
    %706 = vmatpush.bf16.msra.mxu0 %v697
    %707 = vmatpush.bf16.msra.mxu0 %v696
    %708 = vmatpush.bf16.msra.mxu0 %v695
    %709 = vmatpush.bf16.msra.mxu0 %v694
    %710 = vmatpush.bf16.msra.mxu0 %v693
    %711 = vmatpush.bf16.msra.mxu0 %v692
    %712 = vmatpush.bf16.msra.mxu0 %v691
    %713 = vmatpush.bf16.msra.mxu0 %v690
    %714 = vmatmul.bf16.gmra.mxu0 %v656
    %v715 = vpop.f32.mrf.mxu0
    %v716 = vadd.f32 0.0, %v715
    %v717 = vpop.f32.mrf.mxu0
    %v718 = vadd.f32 0.0, %v717
    %719 = vdwg.mxu0
    %v720 = vadd.f32 %v629, %v716
    %v721 = vadd.f32 %v631, %v718
    %v722 = vld [vmem:[%s5] sm:$0x1]
    %v724 = vperm.slane %v722, 0
    %v726 = vmul.f32 %v720, %v724
    %v727 = vmul.f32 %v721, %v724
    %v728 = vld [vmem:[%s6] sm:$0x1]
    %v730 = vperm.slane %v728, 0
    %v732 = vadd.f32 %v726, %v730
    %v733 = vadd.f32 %v727, %v730
    %v734 = vld [vmem:[#allocation4] sm:$0xff]
    %v735 = vld [vmem:[#allocation4 + $0x8] sm:$0xff]
    %v736 = vadd.f32 %v732, %v734
    %v737 = vadd.f32 %v733, %v735
    %v738 = vmax.f32 %v736, 0.0
    %v739 = vmax.f32 %v737, 0.0
    %740 = vst [vmem:[#allocation10] sm:$0xff] %v738
    %741 = vst [vmem:[#allocation10 + $0x8] sm:$0xff] %v739
    // Predicated region
    $region46: #{tpu_custom_call.1} parent=1 // pred_check
      _
    $region47: #{tpu_custom_call.1} parent=1 // pred_check_branch
      %743 = sbr.rel (0) target = $region49
    $region48: #{tpu_custom_call.1} parent=1 // pred_region
      %745 = vsyncadd [#allocation6], 0
      %s746 = sshll.u32 [#allocation10], 4
      %s747 = int_to_ptr.vmem [resolvable:$true] %s746
      %s748 = sshll.u32 %s7, 4
      %s749 = int_to_ptr.hbm [resolvable:$true] %s748
      %754 = dma.vmem_to_hbm [thread:$0]  %s747, 256, %s749, [#allocation6], 128, 128, 8
    $region49: #{tpu_custom_call.1} parent=1 // pred_fallthru
      _
    // Predicated region
    $region50: #{tpu_custom_call.1} parent=1 // pred_check
      _
    $region51: #{tpu_custom_call.1} parent=1 // pred_check_branch
      %756 = sbr.rel (0) target = $region53
    $region52: #{tpu_custom_call.1} parent=1 // pred_region
      %758 = dma.done [#allocation6], 256
    $region53: #{tpu_custom_call.1} parent=1 // pred_fallthru
      _
    %759 = vsyncpa [#allocation5], 1
    %760 = vsyncpa [#allocation8], 1
    %761 = vsyncpa [#allocation6], 1

</llo_original>
